<compile_context>
chip_gen: v7x
topology: tpu7x:2x2x1
jax: 0.10.0
libtpu: 0.0.40
codegen_flags: <defaults>
</compile_context>

<pallas_src>
import jax
import jax.numpy as jnp
from jax.experimental import pallas as pl
from jax.experimental.pallas import tpu as pltpu


def _round_up(x, m):
    return (x + m - 1) // m * m


# --------------------------------------------------------------------------- #
# Kernel
# --------------------------------------------------------------------------- #
def brain_classifier_kernel(x_ref, w_bb_ref, b_bb_ref, w_cls_ref, b_cls_ref,
                            out_ref, acc_ref):
    """Grid = (batch tiles ['parallel'], K tiles ['arbitrary', reduction last])."""
    k = pl.program_id(1)

    @pl.when(k == 0)
    def _():
        acc_ref[...] = jnp.zeros_like(acc_ref)

    # backbone partial product: x cast to bf16 in-kernel, bf16 @ bf16 -> f32 acc
    acc_ref[...] += jnp.dot(x_ref[...].astype(jnp.bfloat16), w_bb_ref[...],
                            preferred_element_type=jnp.float32)

    @pl.when(k == pl.num_programs(1) - 1)
    def _():
        # backbone bias + nn.ReLU()
        h = jnp.maximum(acc_ref[...] + b_bb_ref[...], 0.0)
        # classifier: nn.Linear(embed_dim, n_classes) -> h @ W.T + b (bf16 MXU inputs)
        logits = jnp.dot(h.astype(jnp.bfloat16), w_cls_ref[...],
                         preferred_element_type=jnp.float32) + b_cls_ref[...]
        out_ref[...] = logits.astype(out_ref.dtype)


# --------------------------------------------------------------------------- #
# One-time weight packing (hoisted out of the per-call path)
# --------------------------------------------------------------------------- #
def pack_params(w_bb, b_bb, w_cls, b_cls, *, max_tile_k=2048):
    """Cast/pad weights ONCE. Returns a dict consumed by brain_classifier_forward."""
    in_dim, embed_dim = w_bb.shape
    n_classes = w_cls.shape[1]

    # K tiling: full extent when small; otherwise balanced 128-multiple tiles so
    # the last K tile is not mostly padding.
    if in_dim <= max_tile_k:
        tile_k, k_pad = in_dim, in_dim
    else:
        n_k = -(-in_dim // max_tile_k)
        tile_k = _round_up(-(-in_dim // n_k), 128)
        k_pad = n_k * tile_k

    c_pad = _round_up(n_classes, 128)            # lane-dense output store

    w_bb_p = w_bb.astype(jnp.bfloat16)           # E kept at full extent (no 128 pad)
    if k_pad != in_dim:
        w_bb_p = jnp.pad(w_bb_p, ((0, k_pad - in_dim), (0, 0)))
    b_bb_p = b_bb.astype(jnp.float32).reshape(1, embed_dim)
    w_cls_p = jnp.pad(w_cls.astype(jnp.bfloat16), ((0, 0), (0, c_pad - n_classes)))
    b_cls_p = jnp.pad(b_cls.astype(jnp.float32), (0, c_pad - n_classes)).reshape(1, c_pad)

    return dict(w_bb=w_bb_p, b_bb=b_bb_p, w_cls=w_cls_p, b_cls=b_cls_p,
                in_dim=in_dim, embed_dim=embed_dim, n_classes=n_classes,
                tile_k=tile_k, k_pad=k_pad, c_pad=c_pad)


def _choose_tile_b(B):
    # Maximize tile_b (w_bb is re-streamed from HBM once per batch tile), but:
    #  * cap at 512 so the f32 accumulator / x tile stay modest,
    #  * keep >= 2 batch tiles when B is large so v7x's two TensorCores both work.
    if B <= 256:
        return B                                   # single batch tile
    return min(512, _round_up(-(-B // 2), 8))


# --------------------------------------------------------------------------- #
# Forward wrapper
# --------------------------------------------------------------------------- #
def brain_classifier_forward(x, params):
    """x: (B, 1, n_channels, n_samples) f32 -> logits (B, n_classes) f32."""
    in_dim = params["in_dim"]
    embed_dim = params["embed_dim"]
    n_classes = params["n_classes"]
    tile_k = params["tile_k"]
    k_pad = params["k_pad"]
    c_pad = params["c_pad"]
    w_bb_p, b_bb_p = params["w_bb"], params["b_bb"]
    w_cls_p, b_cls_p = params["w_cls"], params["b_cls"]

    B = x.shape[0]
    tile_b = _choose_tile_b(B)
    b_pad = _round_up(B, tile_b)
    n_b = b_pad // tile_b
    n_k = k_pad // tile_k

    # flatten like BrainMLP (in_dim = n_channels * n_samples); stays f32, cast in-kernel
    x_flat = x.reshape(B, in_dim)
    if b_pad != B or k_pad != in_dim:
        x_flat = jnp.pad(x_flat, ((0, b_pad - B), (0, k_pad - in_dim)))

    # streamed operand specs; deepen pipelining only when there are enough K steps
    if n_k >= 3:
        x_spec = pl.BlockSpec((tile_b, tile_k), lambda i, k: (i, k),
                              pipeline_mode=pl.Buffered(3))
        w_bb_spec = pl.BlockSpec((tile_k, embed_dim), lambda i, k: (k, 0),
                                 pipeline_mode=pl.Buffered(3))
        n_buf = 3
    else:
        x_spec = pl.BlockSpec((tile_b, tile_k), lambda i, k: (i, k))
        w_bb_spec = pl.BlockSpec((tile_k, embed_dim), lambda i, k: (k, 0))
        n_buf = 2

    # explicit VMEM budget (2x safety factor for layout padding / compiler scratch)
    vmem_bytes = (
        n_buf * tile_b * tile_k * 4                      # x tiles (f32)
        + n_buf * tile_k * embed_dim * 2                 # streamed w_bb tiles (bf16)
        + 2 * (embed_dim * c_pad * 2 + embed_dim * 4 + c_pad * 4)  # resident small operands
        + 2 * tile_b * c_pad * 4                         # output tiles (f32)
        + tile_b * embed_dim * 4                         # f32 accumulator scratch
    )
    try:                                                 # generation-aware cap
        vmem_cap = int(pltpu.get_tpu_info().vmem_capacity_bytes)
    except Exception:
        vmem_cap = 64 << 20                              # conservative (v7x per-TC)
    vmem_limit = int(min(max(2 * vmem_bytes, 16 << 20), (5 * vmem_cap) // 8))

    cost = pl.CostEstimate(
        flops=int(2 * b_pad * k_pad * embed_dim + 2 * b_pad * embed_dim * c_pad),
        transcendentals=0,
        bytes_accessed=int(
            b_pad * k_pad * 4                            # x (read once)
            + n_b * k_pad * embed_dim * 2                # w_bb re-streamed per batch tile
            + n_b * embed_dim * c_pad * 2                # w_cls
            + n_b * (embed_dim + c_pad) * 4              # biases
            + b_pad * c_pad * 4),                        # logits out
    )

    out = pl.pallas_call(
        brain_classifier_kernel,
        out_shape=jax.ShapeDtypeStruct((b_pad, c_pad), jnp.float32),
        grid=(n_b, n_k),
        in_specs=[
            x_spec,                                                   # x    (streamed, f32)
            w_bb_spec,                                                # w_bb (streamed, bf16)
            pl.BlockSpec((1, embed_dim), lambda i, k: (0, 0)),        # b_bb (resident)
            pl.BlockSpec((embed_dim, c_pad), lambda i, k: (0, 0)),    # w_cls (resident, bf16)
            pl.BlockSpec((1, c_pad), lambda i, k: (0, 0)),            # b_cls (resident)
        ],
        out_specs=pl.BlockSpec((tile_b, c_pad), lambda i, k: (i, 0)),
        scratch_shapes=[pltpu.VMEM((tile_b, embed_dim), jnp.float32)],
        compiler_params=pltpu.CompilerParams(
            dimension_semantics=("parallel", "arbitrary"),
            vmem_limit_bytes=vmem_limit,
        ),
        cost_estimate=cost,
    )(x_flat, w_bb_p, b_bb_p, w_cls_p, b_cls_p)

    return out[:B, :n_classes]


def init_params(key, in_dim, embed_dim, n_classes):
    """Deterministic PyTorch-style (uniform +-1/sqrt(fan_in)) init, f32."""
    k1, k2, k3, k4 = jax.random.split(key, 4)
    bound_bb = 1.0 / jnp.sqrt(jnp.float32(in_dim))
    bound_cls = 1.0 / jnp.sqrt(jnp.float32(embed_dim))
    # stored as (in_features, out_features) == PyTorch weight.T
    w_bb = jax.random.uniform(k1, (in_dim, embed_dim), jnp.float32, -bound_bb, bound_bb)
    b_bb = jax.random.uniform(k2, (embed_dim,), jnp.float32, -bound_bb, bound_bb)
    w_cls = jax.random.uniform(k3, (embed_dim, n_classes), jnp.float32, -bound_cls, bound_cls)
    b_cls = jax.random.uniform(k4, (n_classes,), jnp.float32, -bound_cls, bound_cls)
    return w_bb, b_bb, w_cls, b_cls


if __name__ == "__main__":
    # small demo shapes consistent with the module:
    # batch=2, n_channels=4, n_samples=16 -> in_dim=64, embed_dim=32, n_classes=8
    B, n_channels, n_samples = 2, 4, 16
    embed_dim, n_classes = 32, 8
    in_dim = n_channels * n_samples

    key = jax.random.PRNGKey(0)
    kx, kp = jax.random.split(key)
    x = jax.random.normal(kx, (B, 1, n_channels, n_samples), jnp.float32)
    w_bb, b_bb, w_cls, b_cls = init_params(kp, in_dim, embed_dim, n_classes)

    # one-time weight packing (cast/pad hoisted out of the per-call path)
    params = pack_params(w_bb, b_bb, w_cls, b_cls)

    logits = brain_classifier_forward(x, params)
    logits = jax.block_until_ready(logits)

    # pure-JAX reference (same bf16 casts on the MXU operands, f32 accumulation)
    xb = x.reshape(B, in_dim).astype(jnp.bfloat16).astype(jnp.float32)
    wb = w_bb.astype(jnp.bfloat16).astype(jnp.float32)
    h_ref = jnp.maximum(
        jnp.dot(xb, wb, precision=jax.lax.Precision.HIGHEST) + b_bb, 0.0)
    hb = h_ref.astype(jnp.bfloat16).astype(jnp.float32)
    wc = w_cls.astype(jnp.bfloat16).astype(jnp.float32)
    ref = jnp.dot(hb, wc, precision=jax.lax.Precision.HIGHEST) + b_cls

    assert logits.shape == (B, n_classes)
    max_err = float(jnp.max(jnp.abs(logits - ref)))
    assert jnp.allclose(logits, ref, atol=2e-2, rtol=2e-2), max_err

    print("KERNEL_OK")
</pallas_src>

<mosaic_0001>
module attributes {stable_mosaic.version = 11 : i64} {
  func.func @brain_classifier_kernel(%arg0: i32, %arg1: i32, %arg2: memref<2x64xf32, #tpu.memory_space<vmem>>, %arg3: memref<64x32xbf16, #tpu.memory_space<vmem>>, %arg4: memref<1x32xf32, #tpu.memory_space<vmem>>, %arg5: memref<32x128xbf16, #tpu.memory_space<vmem>>, %arg6: memref<1x128xf32, #tpu.memory_space<vmem>>, %arg7: memref<2x128xf32, #tpu.memory_space<vmem>>, %arg8: memref<2x32xf32, #tpu.memory_space<vmem>>) attributes {dimension_semantics = [#tpu.dimension_semantics<parallel>, #tpu.dimension_semantics<arbitrary>], iteration_bounds = array<i64: 1, 1>, scalar_prefetch = 0 : i64, scratch_operands = 1 : i64, tpu.core_type = #tpu.core_type<tc>, window_params = [{transform_indices = @transform_0, window_bounds = array<i64: 2, 64>}, {transform_indices = @transform_1, window_bounds = array<i64: 64, 32>}, {pipeline_mode = #tpu.pipeline_mode<synchronous>, transform_indices = @transform_2, window_bounds = array<i64: 1, 32>}, {pipeline_mode = #tpu.pipeline_mode<synchronous>, transform_indices = @transform_3, window_bounds = array<i64: 32, 128>}, {pipeline_mode = #tpu.pipeline_mode<synchronous>, transform_indices = @transform_4, window_bounds = array<i64: 1, 128>}, {transform_indices = @transform_5, window_bounds = array<i64: 2, 128>}]} {
    %c0_i32 = arith.constant 0 : i32
    %0 = arith.cmpi eq, %arg1, %c0_i32 : i32
    %1 = arith.extui %0 : i1 to i32
    %c0_i32_0 = arith.constant 0 : i32
    %2 = arith.cmpi ne, %1, %c0_i32_0 : i32
    scf.if %2 {
      %cst_10 = arith.constant 0.000000e+00 : f32
      %13 = vector.broadcast %cst_10 : f32 to vector<2x32xf32>
      %c0_11 = arith.constant 0 : index
      %c0_12 = arith.constant 0 : index
      %14 = vector.load %arg8[%c0_11, %c0_12] : memref<2x32xf32, #tpu.memory_space<vmem>>, vector<2x32xf32>
      tpu.vector_store %arg8[%c0_11, %c0_12], %13 {strides = array<i32>} : memref<2x32xf32, #tpu.memory_space<vmem>>, vector<2x32xf32>,
    } else {
    }
    %c0 = arith.constant 0 : index
    %c0_1 = arith.constant 0 : index
    %3 = vector.load %arg8[%c0, %c0_1] : memref<2x32xf32, #tpu.memory_space<vmem>>, vector<2x32xf32>
    %c0_2 = arith.constant 0 : index
    %c0_3 = arith.constant 0 : index
    %4 = vector.load %arg2[%c0_2, %c0_3] : memref<2x64xf32, #tpu.memory_space<vmem>>, vector<2x64xf32>
    %5 = arith.truncf %4 : vector<2x64xf32> to vector<2x64xbf16>
    %c0_4 = arith.constant 0 : index
    %c0_5 = arith.constant 0 : index
    %6 = vector.load %arg3[%c0_4, %c0_5] : memref<64x32xbf16, #tpu.memory_space<vmem>>, vector<64x32xbf16>
    %cst = arith.constant dense<0.000000e+00> : vector<2x32xf32>
    %7 = tpu.matmul %5, %6, %cst {dimension_numbers = #tpu.dot_dimension_numbers<[1], [0], [0], [1], [0, 0, 1, 1], [], []>} : vector<2x64xbf16>, vector<64x32xbf16>, vector<2x32xf32> -> vector<2x32xf32>
    %8 = arith.addf %3, %7 : vector<2x32xf32>
    %c0_6 = arith.constant 0 : index
    %c0_7 = arith.constant 0 : index
    %9 = vector.load %arg8[%c0_6, %c0_7] : memref<2x32xf32, #tpu.memory_space<vmem>>, vector<2x32xf32>
    tpu.vector_store %arg8[%c0_6, %c0_7], %8 {strides = array<i32>} : memref<2x32xf32, #tpu.memory_space<vmem>>, vector<2x32xf32>,
    %c0_i32_8 = arith.constant 0 : i32
    %10 = arith.cmpi eq, %arg1, %c0_i32_8 : i32
    %11 = arith.extui %10 : i1 to i32
    %c0_i32_9 = arith.constant 0 : i32
    %12 = arith.cmpi ne, %11, %c0_i32_9 : i32
    scf.if %12 {
      %c0_10 = arith.constant 0 : index
      %c0_11 = arith.constant 0 : index
      %13 = vector.load %arg8[%c0_10, %c0_11] : memref<2x32xf32, #tpu.memory_space<vmem>>, vector<2x32xf32>
      %c0_12 = arith.constant 0 : index
      %c0_13 = arith.constant 0 : index
      %14 = vector.load %arg4[%c0_12, %c0_13] : memref<1x32xf32, #tpu.memory_space<vmem>>, vector<1x32xf32>
      %15 = vector.broadcast %14 : vector<1x32xf32> to vector<2x32xf32>
      %16 = arith.addf %13, %15 : vector<2x32xf32>
      %cst_14 = arith.constant 0.000000e+00 : f32
      %17 = vector.broadcast %cst_14 : f32 to vector<2x32xf32>
      %18 = arith.maximumf %16, %17 : vector<2x32xf32>
      %19 = arith.truncf %18 : vector<2x32xf32> to vector<2x32xbf16>
      %c0_15 = arith.constant 0 : index
      %c0_16 = arith.constant 0 : index
      %20 = vector.load %arg5[%c0_15, %c0_16] : memref<32x128xbf16, #tpu.memory_space<vmem>>, vector<32x128xbf16>
      %cst_17 = arith.constant dense<0.000000e+00> : vector<2x128xf32>
      %21 = tpu.matmul %19, %20, %cst_17 {dimension_numbers = #tpu.dot_dimension_numbers<[1], [0], [0], [1], [0, 0, 1, 1], [], []>} : vector<2x32xbf16>, vector<32x128xbf16>, vector<2x128xf32> -> vector<2x128xf32>
      %c0_18 = arith.constant 0 : index
      %c0_19 = arith.constant 0 : index
      %22 = vector.load %arg6[%c0_18, %c0_19] : memref<1x128xf32, #tpu.memory_space<vmem>>, vector<1x128xf32>
      %23 = vector.broadcast %22 : vector<1x128xf32> to vector<2x128xf32>
      %24 = arith.addf %21, %23 : vector<2x128xf32>
      %c0_20 = arith.constant 0 : index
      %c0_21 = arith.constant 0 : index
      %25 = vector.load %arg7[%c0_20, %c0_21] : memref<2x128xf32, #tpu.memory_space<vmem>>, vector<2x128xf32>
      tpu.vector_store %arg7[%c0_20, %c0_21], %24 {strides = array<i32>} : memref<2x128xf32, #tpu.memory_space<vmem>>, vector<2x128xf32>,
    } else {
    }
    return
  }
  func.func @transform_0(%arg0: i32, %arg1: i32) -> (i32, i32) {
    %c0_i32 = arith.constant 0 : i32
    return %arg0, %arg1 : i32, i32
  }
  func.func @transform_1(%arg0: i32, %arg1: i32) -> (i32, i32) {
    %c0_i32 = arith.constant 0 : i32
    %c0_i32_0 = arith.constant 0 : i32
    return %arg1, %c0_i32 : i32, i32
  }
  func.func @transform_2(%arg0: i32, %arg1: i32) -> (i32, i32) {
    %c0_i32 = arith.constant 0 : i32
    %c0_i32_0 = arith.constant 0 : i32
    %c0_i32_1 = arith.constant 0 : i32
    return %c0_i32, %c0_i32_0 : i32, i32
  }
  func.func @transform_3(%arg0: i32, %arg1: i32) -> (i32, i32) {
    %c0_i32 = arith.constant 0 : i32
    %c0_i32_0 = arith.constant 0 : i32
    %c0_i32_1 = arith.constant 0 : i32
    return %c0_i32, %c0_i32_0 : i32, i32
  }
  func.func @transform_4(%arg0: i32, %arg1: i32) -> (i32, i32) {
    %c0_i32 = arith.constant 0 : i32
    %c0_i32_0 = arith.constant 0 : i32
    %c0_i32_1 = arith.constant 0 : i32
    return %c0_i32, %c0_i32_0 : i32, i32
  }
  func.func @transform_5(%arg0: i32, %arg1: i32) -> (i32, i32) {
    %c0_i32 = arith.constant 0 : i32
    %c0_i32_0 = arith.constant 0 : i32
    return %arg0, %c0_i32 : i32, i32
  }
}

</mosaic_0001>

<llo_original>
// kernel: tpu_custom_call.1
$region0: #{tpu_custom_call.1}
  #allocation0 [shape = 'u32[]', space=smem, size = 0x4, offset = 0x4, fixed_abs, tag = 'smem constant byte address 0x4 - core index']
  #allocation1 [shape = 'u32[144,128]{1,0:T(1,128)}', space=vmem, size = 0x12000, scoped, tag = 'internal scratch']
  #allocation2 [shape = 'f32[2,32]{1,0:T(2,128)}', space=vmem, size = 0x400, scoped, tag = 'scratch operand']
  %s0 = inlined_call_operand.vmem [shape: f32[2,64], index: 0, kind: input, shape index: {}]
  %s1 = inlined_call_operand.vmem [shape: bf16[64,32], index: 1, kind: input, shape index: {}]
  %s2 = inlined_call_operand.vmem [shape: f32[1,32], index: 2, kind: input, shape index: {}]
  %s3 = inlined_call_operand.vmem [shape: bf16[32,128], index: 3, kind: input, shape index: {}]
  %s4 = inlined_call_operand.vmem [shape: f32[1,128], index: 4, kind: input, shape index: {}]
  %s5 = inlined_call_operand.hbm [shape: f32[2,128], index: 5, kind: output, shape index: {}]
  %s6 = sld [smem:[#allocation0]]
  $region38: #{tpu_custom_call.1} parent=0
    _
  %s8 = ssub.s32 1, %s6
  %s9 = scalar_select 0, %s8, %s6
  $region1: #{tpu_custom_call.1} parent=0
    #allocation3 [shape = 'u8[1024]{0}', space=vmem, size = 0x400, scoped, tag = 'output window, operand 0, single buffered']
    #allocation4 [shape = 's32[1]{0}', space=sflag, size = 0x4, scoped, tag = 'scoped memory for tpu_custom_call.1']
    %10 = vsyncpa [#allocation4], 0
    // Predicated region
    $region2: #{tpu_custom_call.1} parent=1 // pred_check
      _
    $region3: #{tpu_custom_call.1} parent=1 // pred_check_branch
      %12 = sbr.rel (0) target = $region5
    $region4: #{tpu_custom_call.1} parent=1 // pred_region
      _
    $region5: #{tpu_custom_call.1} parent=1 // pred_fallthru
      _
    // Predicated region
    $region6: #{tpu_custom_call.1} parent=1 // pred_check
      _
    $region7: #{tpu_custom_call.1} parent=1 // pred_check_branch
      %14 = sbr.rel (0) target = $region9
    $region8: #{tpu_custom_call.1} parent=1 // pred_region
      _
    $region9: #{tpu_custom_call.1} parent=1 // pred_fallthru
      _
    // Predicated region
    $region10: #{tpu_custom_call.1} parent=1 // pred_check
      _
    $region11: #{tpu_custom_call.1} parent=1 // pred_check_branch
      %16 = sbr.rel (0) target = $region13
    $region12: #{tpu_custom_call.1} parent=1 // pred_region
      _
    $region13: #{tpu_custom_call.1} parent=1 // pred_fallthru
      _
    // Predicated region
    $region14: #{tpu_custom_call.1} parent=1 // pred_check
      _
    $region15: #{tpu_custom_call.1} parent=1 // pred_check_branch
      %18 = sbr.rel (0) target = $region17
    $region16: #{tpu_custom_call.1} parent=1 // pred_region
      _
    $region17: #{tpu_custom_call.1} parent=1 // pred_fallthru
      _
    // Predicated region
    $region18: #{tpu_custom_call.1} parent=1 // pred_check
      _
    $region19: #{tpu_custom_call.1} parent=1 // pred_check_branch
      %20 = sbr.rel (0) target = $region21
    $region20: #{tpu_custom_call.1} parent=1 // pred_region
      _
    $region21: #{tpu_custom_call.1} parent=1 // pred_fallthru
      _
    %p22 = scmp.eq.s32.totalorder 0, 0
    // Predicated region
    $region22: #{tpu_custom_call.1} parent=1 // pred_check
      %p23 = pneg %p22
    $region23: #{tpu_custom_call.1} parent=1 // pred_check_branch
      %25 = sbr.rel (%p23) target = $region25
    $region24: #{tpu_custom_call.1} parent=1 // pred_region
      %vm26 = vcmask 254976
      %27 = vst.msk [vmem:[#allocation2] sm:$0x3] %vm26, 0.0
    $region25: #{tpu_custom_call.1} parent=1 // pred_fallthru
      _
    %v28 = vld [vmem:[#allocation2] sm:$0x3]
    %v29 = vld [vmem:[%s0] sm:$0x3]
    %v30 = vpack.c.bf16 %v29, %v29
    %v31 = vld [vmem:[%s1] sm:$0xf]
    %v32 = vld [vmem:[%s1 + $0x4] sm:$0xf]
    %v33 = vld [vmem:[%s1 + $0x8] sm:$0xf]
    %v34 = vld [vmem:[%s1 + $0xc] sm:$0xf]
    %v35 = vld [vmem:[%s1 + $0x10] sm:$0xf]
    %v36 = vld [vmem:[%s1 + $0x14] sm:$0xf]
    %v37 = vld [vmem:[%s1 + $0x18] sm:$0xf]
    %v38 = vld [vmem:[%s1 + $0x1c] sm:$0xf]
    %v47 = vunpack.c.l.b16 %v31
    %v48 = vunpack.c.l.b16 %v32
    %v49 = vunpack.c.l.b16 %v33
    %v50 = vunpack.c.l.b16 %v34
    %v51 = vunpack.c.l.b16 %v35
    %v52 = vunpack.c.l.b16 %v36
    %v53 = vunpack.c.l.b16 %v37
    %v54 = vunpack.c.l.b16 %v38
    %v55 = vpack.c.b16 %v48, %v47
    %v56 = vpack.c.b16 %v50, %v49
    %v57 = vpack.c.b16 %v52, %v51
    %v58 = vpack.c.b16 %v54, %v53
    %vm63 = vcmask 523264
    %v65 = vsel %vm63, %v30, 0
    %67 = vmatprep.subr.bf16.mxu0 0
    %68 = vmatpush1.bf16.msra.mxu0 %v55
    %69 = vmatprep.subr.bf16.mxu0 0
    %70 = vmatpush1.bf16.msra.mxu0 %v56
    %71 = vmatprep.subr.bf16.mxu0 0
    %72 = vmatpush1.bf16.msra.mxu0 %v57
    %73 = vmatprep.subr.bf16.mxu0 0
    %74 = vmatpush1.bf16.msra.mxu0 %v58
    %75 = vmatprep.subr.bf16.mxu0 0
    %76 = vmatpush1.bf16.msra.mxu0 0
    %77 = vmatprep.subr.bf16.mxu0 0
    %78 = vmatpush1.bf16.msra.mxu0 0
    %79 = vmatprep.subr.bf16.mxu0 0
    %80 = vmatpush1.bf16.msra.mxu0 0
    %81 = vmatprep.subr.bf16.mxu0 0
    %82 = vmatpush1.bf16.msra.mxu0 0
    %83 = vmatprep.subr.bf16.mxu0 0
    %84 = vmatpush1.bf16.msra.mxu0 0
    %85 = vmatprep.subr.bf16.mxu0 0
    %86 = vmatpush1.bf16.msra.mxu0 0
    %87 = vmatprep.subr.bf16.mxu0 0
    %88 = vmatpush1.bf16.msra.mxu0 0
    %89 = vmatprep.subr.bf16.mxu0 0
    %90 = vmatpush1.bf16.msra.mxu0 0
    %91 = vmatprep.subr.bf16.mxu0 0
    %92 = vmatpush1.bf16.msra.mxu0 0
    %93 = vmatprep.subr.bf16.mxu0 0
    %94 = vmatpush1.bf16.msra.mxu0 0
    %95 = vmatprep.subr.bf16.mxu0 0
    %96 = vmatpush1.bf16.msra.mxu0 0
    %97 = vmatprep.subr.bf16.mxu0 0
    %98 = vmatpush1.bf16.msra.mxu0 0
    %99 = vmatprep.mubr.bf16.mxu0 0
    %100 = vmatmul.mubr.bf16.gmra.mrb[0].mxu0 %v65
    %v101 = vpop.f32.mrb[0].mxu0
    %v102 = vadd.f32 0.0, %v101
    %v103 = vpop.f32.mrb[0].mxu0
    %v104 = vpop.f32.mrb[0].mxu0
    %v105 = vpop.f32.mrb[0].mxu0
    %106 = vdwg.mxu0
    %v107 = vadd.f32 %v28, %v102
    %vm108 = vcmask 254976
    %109 = vst.msk [vmem:[#allocation2] sm:$0x3] %vm108, %v107
    // Predicated region
    $region26: #{tpu_custom_call.1} parent=1 // pred_check
      %p110 = pneg %p22
    $region27: #{tpu_custom_call.1} parent=1 // pred_check_branch
      %112 = sbr.rel (%p110) target = $region29
    $region28: #{tpu_custom_call.1} parent=1 // pred_region
      %v113 = vld [vmem:[#allocation2] sm:$0x3]
      %v114 = vld [vmem:[%s2] sm:$0x1]
      %v116 = vlaneseq
      %v117 = vshrl.u32 %v116, 7
      %v118 = vsub.s32 0, %v117
      %v119 = vrot.slane %v114, %v118
      %v121 = vadd.f32 %v113, %v119
      %v122 = vmax.f32 %v121, 0.0
      %v123 = vpack.c.bf16 %v122, %v122
      %v124 = vld [vmem:[%s3] sm:$0xf]
      %v125 = vld [vmem:[%s3 + $0x4] sm:$0xf]
      %v126 = vld [vmem:[%s3 + $0x8] sm:$0xf]
      %v127 = vld [vmem:[%s3 + $0xc] sm:$0xf]
      %v128 = vld [vmem:[%s4] sm:$0x1]
      %v130 = vlaneseq
      %v131 = vshrl.u32 %v130, 7
      %v132 = vsub.s32 0, %v131
      %v133 = vrot.slane %v128, %v132
      %v139 = vunpack.c.l.b16 %v124
      %v140 = vunpack.c.l.b16 %v125
      %v141 = vunpack.c.l.b16 %v126
      %v142 = vunpack.c.l.b16 %v127
      %v143 = vpack.c.b16 %v140, %v139
      %v144 = vpack.c.b16 %v142, %v141
      %vm147 = vcmask 261120
      %v149 = vsel %vm147, %v123, 0
      %151 = vmatprep.subr.bf16.mxu0 0
      %152 = vmatpush1.bf16.msra.mxu0 %v143
      %153 = vmatprep.subr.bf16.mxu0 0
      %154 = vmatpush1.bf16.msra.mxu0 %v144
      %155 = vmatprep.subr.bf16.mxu0 0
      %156 = vmatpush1.bf16.msra.mxu0 0
      %157 = vmatprep.subr.bf16.mxu0 0
      %158 = vmatpush1.bf16.msra.mxu0 0
      %159 = vmatprep.subr.bf16.mxu0 0
      %160 = vmatpush1.bf16.msra.mxu0 0
      %161 = vmatprep.subr.bf16.mxu0 0
      %162 = vmatpush1.bf16.msra.mxu0 0
      %163 = vmatprep.subr.bf16.mxu0 0
      %164 = vmatpush1.bf16.msra.mxu0 0
      %165 = vmatprep.subr.bf16.mxu0 0
      %166 = vmatpush1.bf16.msra.mxu0 0
      %167 = vmatprep.subr.bf16.mxu0 0
      %168 = vmatpush1.bf16.msra.mxu0 0
      %169 = vmatprep.subr.bf16.mxu0 0
      %170 = vmatpush1.bf16.msra.mxu0 0
      %171 = vmatprep.subr.bf16.mxu0 0
      %172 = vmatpush1.bf16.msra.mxu0 0
      %173 = vmatprep.subr.bf16.mxu0 0
      %174 = vmatpush1.bf16.msra.mxu0 0
      %175 = vmatprep.subr.bf16.mxu0 0
      %176 = vmatpush1.bf16.msra.mxu0 0
      %177 = vmatprep.subr.bf16.mxu0 0
      %178 = vmatpush1.bf16.msra.mxu0 0
      %179 = vmatprep.subr.bf16.mxu0 0
      %180 = vmatpush1.bf16.msra.mxu0 0
      %181 = vmatprep.subr.bf16.mxu0 0
      %182 = vmatpush1.bf16.msra.mxu0 0
      %183 = vmatprep.mubr.bf16.mxu0 0
      %184 = vmatmul.mubr.bf16.gmra.mrb[0].mxu0 %v149
      %v185 = vpop.f32.mrb[0].mxu0
      %v186 = vadd.f32 %v133, %v185
      %v187 = vpop.f32.mrb[0].mxu0
      %v188 = vpop.f32.mrb[0].mxu0
      %v189 = vpop.f32.mrb[0].mxu0
      %190 = vdwg.mxu0
      %191 = vst [vmem:[#allocation3] sm:$0x3] %v186
    $region29: #{tpu_custom_call.1} parent=1 // pred_fallthru
      _
    // Predicated region
    $region30: #{tpu_custom_call.1} parent=1 // pred_check
      _
    $region31: #{tpu_custom_call.1} parent=1 // pred_check_branch
      %193 = sbr.rel (0) target = $region33
    $region32: #{tpu_custom_call.1} parent=1 // pred_region
      %s195 = ssub.s32 32, 32
      %196 = vsyncadd [#allocation4], %s195
      %s198 = sshll.u32 [#allocation3], 4
      %s199 = int_to_ptr.vmem [resolvable:$true] %s198
      %201 = dma.vmem_to_hbm [thread:$0]  %s199, 32, %s5, [#allocation4]
    $region33: #{tpu_custom_call.1} parent=1 // pred_fallthru
      _
    // Predicated region
    $region34: #{tpu_custom_call.1} parent=1 // pred_check
      _
    $region35: #{tpu_custom_call.1} parent=1 // pred_check_branch
      %203 = sbr.rel (0) target = $region37
    $region36: #{tpu_custom_call.1} parent=1 // pred_region
      %204 = dma.done [#allocation4], 32
    $region37: #{tpu_custom_call.1} parent=1 // pred_fallthru
      _
    %205 = vsyncpa [#allocation4], 1

</llo_original>
